<compile_context>
chip_gen: v7x
topology: tpu7x:2x2x1
jax: 0.10.0
libtpu: 0.0.40
codegen_flags: <defaults>
</compile_context>

<pallas_src>
import jax
import jax.numpy as jnp
from jax.experimental import pallas as pl
from jax.experimental.pallas import tpu as pltpu

_IN_ = 15
_OUT_ = 2
SIZES = (_IN_, 64, 32, 16, 8, _OUT_)


def _round_up(n, m):
    return ((n + m - 1) // m) * m


def _mlp_kernel(x_ref,
                w1_ref, b1_ref,
                w2_ref, b2_ref,
                w3_ref, b3_ref,
                w4_ref, b4_ref,
                dw_ref, db_ref,
                o_ref):
    # Feature-major: activations are (features, TB), batch on the lane axis.
    h = x_ref[...]  # (15, TB)
    for w_ref, b_ref in ((w1_ref, b1_ref), (w2_ref, b2_ref),
                         (w3_ref, b3_ref), (w4_ref, b4_ref)):
        # (out, in) @ (in, TB) -> (out, TB); bias (out, 1) broadcasts on lanes.
        h = jnp.dot(w_ref[...], h, preferred_element_type=jnp.float32) + b_ref[...]
        h = jnp.maximum(h, 0.0)
        h = h.astype(w_ref.dtype)  # no-op for f32; enables bf16 MXU operands

    # linear5 + softmax over 2 classes == sigmoid of the logit difference:
    # z = (w5[1,:]-w5[0,:]) . h4 + (b5[1]-b5[0])   -> (1, TB)
    z = jnp.sum(h.astype(jnp.float32) * dw_ref[...], axis=0, keepdims=True)
    z = z + db_ref[...]
    o_ref[...] = (1.0 / (1.0 + jnp.exp(-z))).astype(o_ref.dtype)  # p(class 1)


def deeper_nn_forward(x, params, *, block_cols=2048, min_pallas_batch=0):
    """x: (B, 15); params: list of (W, b) in PyTorch layout, W = (out, in).

    min_pallas_batch: batches smaller than this are dispatched to plain XLA
    (a single-step grid is dominated by launch overhead).  Default 0 so the
    Pallas path is always exercised.
    """
    B = x.shape[0]
    x = x.astype(jnp.float32)

    if B < min_pallas_batch:
        return _reference_forward(x, params)

    # Batch tile on the lane axis: must be a multiple of 128.
    TB = min(block_cols, _round_up(B, 128))
    TB = max(128, _round_up(TB, 128))
    # Prefer >= 2 grid steps so the "parallel" axis can use both TCs on v7x.
    if TB >= _round_up(B, 128) and B > 256:
        TB = _round_up(pl.cdiv(B, 2), 128)
    B_pad = _round_up(B, TB)
    nb = B_pad // TB

    # Zero-pad the batch, then transpose to feature-major (15, B_pad).
    x_t = jnp.pad(x, ((0, B_pad - B), (0, 0))).T

    (w1, b1), (w2, b2), (w3, b3), (w4, b4), (w5, b5) = params

    # Closed-form 2-class softmax params (feature-major column vectors).
    dw = (w5[1, :] - w5[0, :]).reshape(-1, 1).astype(jnp.float32)  # (8, 1)
    db = (b5[1] - b5[0]).reshape(1, 1).astype(jnp.float32)         # (1, 1)

    flat_args = [x_t]
    in_specs = [pl.BlockSpec((_IN_, TB), lambda i: (0, i))]
    for (w, b) in ((w1, b1), (w2, b2), (w3, b3), (w4, b4)):
        w = jnp.asarray(w)                                # (out, in)
        b2d = jnp.asarray(b).reshape(-1, 1).astype(jnp.float32)  # (out, 1)
        flat_args += [w, b2d]
        # Weights/biases stay VMEM-resident: same block for every grid step.
        in_specs += [
            pl.BlockSpec(w.shape, lambda i: (0, 0)),
            pl.BlockSpec(b2d.shape, lambda i: (0, 0)),
        ]
    flat_args += [dw, db]
    in_specs += [
        pl.BlockSpec(dw.shape, lambda i: (0, 0)),
        pl.BlockSpec(db.shape, lambda i: (0, 0)),
    ]

    p1 = pl.pallas_call(
        _mlp_kernel,
        out_shape=jax.ShapeDtypeStruct((1, B_pad), jnp.float32),
        grid=(nb,),
        in_specs=in_specs,
        out_specs=pl.BlockSpec((1, TB), lambda i: (0, i)),  # lane-dense output
        compiler_params=pltpu.CompilerParams(
            dimension_semantics=("parallel",),
        ),
    )(*flat_args)

    p1 = p1[0, :B]
    return jnp.stack([1.0 - p1, p1], axis=-1)  # (B, 2), rows sum to 1


def init_params(key):
    """Deterministic init mimicking nn.Linear default (uniform +/- 1/sqrt(fan_in)).

    Weights are stored PyTorch-style: W has shape (out_features, in_features).
    """
    params = []
    for i in range(len(SIZES) - 1):
        fan_in, fan_out = SIZES[i], SIZES[i + 1]
        key, kw, kb = jax.random.split(key, 3)
        bound = 1.0 / jnp.sqrt(fan_in)
        w = jax.random.uniform(kw, (fan_out, fan_in), jnp.float32, -bound, bound)
        b = jax.random.uniform(kb, (fan_out,), jnp.float32, -bound, bound)
        params.append((w, b))
    return params


def _reference_forward(x, params):
    h = x
    for i, (w, b) in enumerate(params):
        h = h @ w.T + b
        if i < len(params) - 1:
            h = jnp.maximum(h, 0.0)
    return jax.nn.softmax(h, axis=-1)


if __name__ == "__main__":
    key = jax.random.PRNGKey(0)
    key, kx1, kx2 = jax.random.split(key, 3)
    params = init_params(key)

    # Small shape consistent with the module (features=15).
    batch = 8
    x = jax.random.normal(kx1, (batch, _IN_), jnp.float32)
    out = jax.block_until_ready(deeper_nn_forward(x, params))
    ref = _reference_forward(x, params)
    assert out.shape == (batch, _OUT_)
    assert jnp.allclose(out, ref, atol=1e-5, rtol=1e-5), "mismatch vs reference (small batch)"
    assert jnp.allclose(jnp.sum(out, axis=-1), 1.0, atol=1e-5), "softmax rows must sum to 1"

    # Exercise the multi-step grid path (>=2 lane tiles + zero padding).
    batch2 = 600
    x2 = jax.random.normal(kx2, (batch2, _IN_), jnp.float32)
    out2 = jax.block_until_ready(deeper_nn_forward(x2, params))
    ref2 = _reference_forward(x2, params)
    assert out2.shape == (batch2, _OUT_)
    assert jnp.allclose(out2, ref2, atol=1e-5, rtol=1e-5), "mismatch vs reference (tiled batch)"

    print("KERNEL_OK")
</pallas_src>

<mosaic_0001>
module attributes {stable_mosaic.version = 11 : i64} {
  func.func @_mlp_kernel(%arg0: i32, %arg1: memref<15x128xf32, #tpu.memory_space<vmem>>, %arg2: memref<64x15xf32, #tpu.memory_space<vmem>>, %arg3: memref<64x1xf32, #tpu.memory_space<vmem>>, %arg4: memref<32x64xf32, #tpu.memory_space<vmem>>, %arg5: memref<32x1xf32, #tpu.memory_space<vmem>>, %arg6: memref<16x32xf32, #tpu.memory_space<vmem>>, %arg7: memref<16x1xf32, #tpu.memory_space<vmem>>, %arg8: memref<8x16xf32, #tpu.memory_space<vmem>>, %arg9: memref<8x1xf32, #tpu.memory_space<vmem>>, %arg10: memref<8x1xf32, #tpu.memory_space<vmem>>, %arg11: memref<1x1xf32, #tpu.memory_space<vmem>>, %arg12: memref<1x128xf32, #tpu.memory_space<vmem>>) attributes {dimension_semantics = [#tpu.dimension_semantics<parallel>], iteration_bounds = array<i64: 1>, scalar_prefetch = 0 : i64, scratch_operands = 0 : i64, tpu.core_type = #tpu.core_type<tc>, window_params = [{transform_indices = @transform_0, window_bounds = array<i64: 15, 128>}, {pipeline_mode = #tpu.pipeline_mode<synchronous>, transform_indices = @transform_1, window_bounds = array<i64: 64, 15>}, {pipeline_mode = #tpu.pipeline_mode<synchronous>, transform_indices = @transform_2, window_bounds = array<i64: 64, 1>}, {pipeline_mode = #tpu.pipeline_mode<synchronous>, transform_indices = @transform_3, window_bounds = array<i64: 32, 64>}, {pipeline_mode = #tpu.pipeline_mode<synchronous>, transform_indices = @transform_4, window_bounds = array<i64: 32, 1>}, {pipeline_mode = #tpu.pipeline_mode<synchronous>, transform_indices = @transform_5, window_bounds = array<i64: 16, 32>}, {pipeline_mode = #tpu.pipeline_mode<synchronous>, transform_indices = @transform_6, window_bounds = array<i64: 16, 1>}, {pipeline_mode = #tpu.pipeline_mode<synchronous>, transform_indices = @transform_7, window_bounds = array<i64: 8, 16>}, {pipeline_mode = #tpu.pipeline_mode<synchronous>, transform_indices = @transform_8, window_bounds = array<i64: 8, 1>}, {pipeline_mode = #tpu.pipeline_mode<synchronous>, transform_indices = @transform_9, window_bounds = array<i64: 8, 1>}, {pipeline_mode = #tpu.pipeline_mode<synchronous>, transform_indices = @transform_10, window_bounds = array<i64: 1, 1>}, {transform_indices = @transform_11, window_bounds = array<i64: 1, 128>}]} {
    %c0 = arith.constant 0 : index
    %c0_0 = arith.constant 0 : index
    %0 = vector.load %arg1[%c0, %c0_0] : memref<15x128xf32, #tpu.memory_space<vmem>>, vector<15x128xf32>
    %c0_1 = arith.constant 0 : index
    %c0_2 = arith.constant 0 : index
    %1 = vector.load %arg2[%c0_1, %c0_2] : memref<64x15xf32, #tpu.memory_space<vmem>>, vector<64x15xf32>
    %cst = arith.constant dense<0.000000e+00> : vector<64x128xf32>
    %2 = tpu.matmul %1, %0, %cst {dimension_numbers = #tpu.dot_dimension_numbers<[1], [0], [0], [1], [0, 0, 1, 1], [], []>} : vector<64x15xf32>, vector<15x128xf32>, vector<64x128xf32> -> vector<64x128xf32>
    %c0_3 = arith.constant 0 : index
    %c0_4 = arith.constant 0 : index
    %3 = vector.load %arg3[%c0_3, %c0_4] : memref<64x1xf32, #tpu.memory_space<vmem>>, vector<64x1xf32>
    %4 = vector.broadcast %3 : vector<64x1xf32> to vector<64x128xf32>
    %5 = arith.addf %2, %4 : vector<64x128xf32>
    %cst_5 = arith.constant 0.000000e+00 : f32
    %6 = vector.broadcast %cst_5 : f32 to vector<64x128xf32>
    %7 = arith.maximumf %5, %6 : vector<64x128xf32>
    %c0_6 = arith.constant 0 : index
    %c0_7 = arith.constant 0 : index
    %8 = vector.load %arg4[%c0_6, %c0_7] : memref<32x64xf32, #tpu.memory_space<vmem>>, vector<32x64xf32>
    %cst_8 = arith.constant dense<0.000000e+00> : vector<32x128xf32>
    %9 = tpu.matmul %8, %7, %cst_8 {dimension_numbers = #tpu.dot_dimension_numbers<[1], [0], [0], [1], [0, 0, 1, 1], [], []>} : vector<32x64xf32>, vector<64x128xf32>, vector<32x128xf32> -> vector<32x128xf32>
    %c0_9 = arith.constant 0 : index
    %c0_10 = arith.constant 0 : index
    %10 = vector.load %arg5[%c0_9, %c0_10] : memref<32x1xf32, #tpu.memory_space<vmem>>, vector<32x1xf32>
    %11 = vector.broadcast %10 : vector<32x1xf32> to vector<32x128xf32>
    %12 = arith.addf %9, %11 : vector<32x128xf32>
    %cst_11 = arith.constant 0.000000e+00 : f32
    %13 = vector.broadcast %cst_11 : f32 to vector<32x128xf32>
    %14 = arith.maximumf %12, %13 : vector<32x128xf32>
    %c0_12 = arith.constant 0 : index
    %c0_13 = arith.constant 0 : index
    %15 = vector.load %arg6[%c0_12, %c0_13] : memref<16x32xf32, #tpu.memory_space<vmem>>, vector<16x32xf32>
    %cst_14 = arith.constant dense<0.000000e+00> : vector<16x128xf32>
    %16 = tpu.matmul %15, %14, %cst_14 {dimension_numbers = #tpu.dot_dimension_numbers<[1], [0], [0], [1], [0, 0, 1, 1], [], []>} : vector<16x32xf32>, vector<32x128xf32>, vector<16x128xf32> -> vector<16x128xf32>
    %c0_15 = arith.constant 0 : index
    %c0_16 = arith.constant 0 : index
    %17 = vector.load %arg7[%c0_15, %c0_16] : memref<16x1xf32, #tpu.memory_space<vmem>>, vector<16x1xf32>
    %18 = vector.broadcast %17 : vector<16x1xf32> to vector<16x128xf32>
    %19 = arith.addf %16, %18 : vector<16x128xf32>
    %cst_17 = arith.constant 0.000000e+00 : f32
    %20 = vector.broadcast %cst_17 : f32 to vector<16x128xf32>
    %21 = arith.maximumf %19, %20 : vector<16x128xf32>
    %c0_18 = arith.constant 0 : index
    %c0_19 = arith.constant 0 : index
    %22 = vector.load %arg8[%c0_18, %c0_19] : memref<8x16xf32, #tpu.memory_space<vmem>>, vector<8x16xf32>
    %cst_20 = arith.constant dense<0.000000e+00> : vector<8x128xf32>
    %23 = tpu.matmul %22, %21, %cst_20 {dimension_numbers = #tpu.dot_dimension_numbers<[1], [0], [0], [1], [0, 0, 1, 1], [], []>} : vector<8x16xf32>, vector<16x128xf32>, vector<8x128xf32> -> vector<8x128xf32>
    %c0_21 = arith.constant 0 : index
    %c0_22 = arith.constant 0 : index
    %24 = vector.load %arg9[%c0_21, %c0_22] : memref<8x1xf32, #tpu.memory_space<vmem>>, vector<8x1xf32>
    %25 = vector.broadcast %24 : vector<8x1xf32> to vector<8x128xf32>
    %26 = arith.addf %23, %25 : vector<8x128xf32>
    %cst_23 = arith.constant 0.000000e+00 : f32
    %27 = vector.broadcast %cst_23 : f32 to vector<8x128xf32>
    %28 = arith.maximumf %26, %27 : vector<8x128xf32>
    %c0_24 = arith.constant 0 : index
    %c0_25 = arith.constant 0 : index
    %29 = vector.load %arg10[%c0_24, %c0_25] : memref<8x1xf32, #tpu.memory_space<vmem>>, vector<8x1xf32>
    %30 = vector.broadcast %29 : vector<8x1xf32> to vector<8x128xf32>
    %31 = arith.mulf %28, %30 : vector<8x128xf32>
    %cst_26 = arith.constant dense<0.000000e+00> : vector<128xf32>
    %32 = vector.multi_reduction <add>, %31, %cst_26 [0] : vector<8x128xf32> to vector<128xf32>
    %33 = vector.shape_cast %32 : vector<128xf32> to vector<1x128xf32>
    %c0_27 = arith.constant 0 : index
    %c0_28 = arith.constant 0 : index
    %34 = vector.load %arg11[%c0_27, %c0_28] : memref<1x1xf32, #tpu.memory_space<vmem>>, vector<1x1xf32>
    %35 = vector.broadcast %34 : vector<1x1xf32> to vector<1x128xf32>
    %36 = arith.addf %33, %35 : vector<1x128xf32>
    %cst_29 = arith.constant 0.000000e+00 : f32
    %37 = vector.broadcast %cst_29 : f32 to vector<1x128xf32>
    %38 = arith.subf %37, %36 : vector<1x128xf32>
    %39 = math.exp %38 : vector<1x128xf32>
    %cst_30 = arith.constant 1.000000e+00 : f32
    %40 = vector.broadcast %cst_30 : f32 to vector<1x128xf32>
    %41 = arith.addf %40, %39 : vector<1x128xf32>
    %cst_31 = arith.constant 1.000000e+00 : f32
    %42 = vector.broadcast %cst_31 : f32 to vector<1x128xf32>
    %43 = arith.divf %42, %41 : vector<1x128xf32>
    %c0_32 = arith.constant 0 : index
    %c0_33 = arith.constant 0 : index
    %44 = vector.load %arg12[%c0_32, %c0_33] : memref<1x128xf32, #tpu.memory_space<vmem>>, vector<1x128xf32>
    tpu.vector_store %arg12[%c0_32, %c0_33], %43 {strides = array<i32>} : memref<1x128xf32, #tpu.memory_space<vmem>>, vector<1x128xf32>,
    return
  }
  func.func @transform_0(%arg0: i32) -> (i32, i32) {
    %c0_i32 = arith.constant 0 : i32
    %c0_i32_0 = arith.constant 0 : i32
    return %c0_i32, %arg0 : i32, i32
  }
  func.func @transform_1(%arg0: i32) -> (i32, i32) {
    %c0_i32 = arith.constant 0 : i32
    %c0_i32_0 = arith.constant 0 : i32
    %c0_i32_1 = arith.constant 0 : i32
    return %c0_i32, %c0_i32_0 : i32, i32
  }
  func.func @transform_2(%arg0: i32) -> (i32, i32) {
    %c0_i32 = arith.constant 0 : i32
    %c0_i32_0 = arith.constant 0 : i32
    %c0_i32_1 = arith.constant 0 : i32
    return %c0_i32, %c0_i32_0 : i32, i32
  }
  func.func @transform_3(%arg0: i32) -> (i32, i32) {
    %c0_i32 = arith.constant 0 : i32
    %c0_i32_0 = arith.constant 0 : i32
    %c0_i32_1 = arith.constant 0 : i32
    return %c0_i32, %c0_i32_0 : i32, i32
  }
  func.func @transform_4(%arg0: i32) -> (i32, i32) {
    %c0_i32 = arith.constant 0 : i32
    %c0_i32_0 = arith.constant 0 : i32
    %c0_i32_1 = arith.constant 0 : i32
    return %c0_i32, %c0_i32_0 : i32, i32
  }
  func.func @transform_5(%arg0: i32) -> (i32, i32) {
    %c0_i32 = arith.constant 0 : i32
    %c0_i32_0 = arith.constant 0 : i32
    %c0_i32_1 = arith.constant 0 : i32
    return %c0_i32, %c0_i32_0 : i32, i32
  }
  func.func @transform_6(%arg0: i32) -> (i32, i32) {
    %c0_i32 = arith.constant 0 : i32
    %c0_i32_0 = arith.constant 0 : i32
    %c0_i32_1 = arith.constant 0 : i32
    return %c0_i32, %c0_i32_0 : i32, i32
  }
  func.func @transform_7(%arg0: i32) -> (i32, i32) {
    %c0_i32 = arith.constant 0 : i32
    %c0_i32_0 = arith.constant 0 : i32
    %c0_i32_1 = arith.constant 0 : i32
    return %c0_i32, %c0_i32_0 : i32, i32
  }
  func.func @transform_8(%arg0: i32) -> (i32, i32) {
    %c0_i32 = arith.constant 0 : i32
    %c0_i32_0 = arith.constant 0 : i32
    %c0_i32_1 = arith.constant 0 : i32
    return %c0_i32, %c0_i32_0 : i32, i32
  }
  func.func @transform_9(%arg0: i32) -> (i32, i32) {
    %c0_i32 = arith.constant 0 : i32
    %c0_i32_0 = arith.constant 0 : i32
    %c0_i32_1 = arith.constant 0 : i32
    return %c0_i32, %c0_i32_0 : i32, i32
  }
  func.func @transform_10(%arg0: i32) -> (i32, i32) {
    %c0_i32 = arith.constant 0 : i32
    %c0_i32_0 = arith.constant 0 : i32
    %c0_i32_1 = arith.constant 0 : i32
    return %c0_i32, %c0_i32_0 : i32, i32
  }
  func.func @transform_11(%arg0: i32) -> (i32, i32) {
    %c0_i32 = arith.constant 0 : i32
    %c0_i32_0 = arith.constant 0 : i32
    return %c0_i32, %arg0 : i32, i32
  }
}

</mosaic_0001>

<llo_original>
// kernel: tpu_custom_call.1
$region0: #{tpu_custom_call.1}
  #allocation0 [shape = 'u32[]', space=smem, size = 0x4, offset = 0x4, fixed_abs, tag = 'smem constant byte address 0x4 - core index']
  #allocation1 [shape = 'u32[144,128]{1,0:T(1,128)}', space=vmem, size = 0x12000, scoped, tag = 'internal scratch']
  #allocation2 [shape = 'f32[1,1]{1,0:T(1,128)S(1)}', space=vmem, size = 0x200, scoped, tag = 'scoped memory for tpu_custom_call.1']
  %s0 = inlined_call_operand.vmem [shape: f32[15,128], index: 0, kind: input, shape index: {}]
  %s1 = inlined_call_operand.vmem [shape: f32[64,15], index: 1, kind: input, shape index: {}]
  %s2 = inlined_call_operand.vmem [shape: f32[64,1], index: 2, kind: input, shape index: {}]
  %s3 = inlined_call_operand.vmem [shape: f32[32,64], index: 3, kind: input, shape index: {}]
  %s4 = inlined_call_operand.vmem [shape: f32[32,1], index: 4, kind: input, shape index: {}]
  %s5 = inlined_call_operand.vmem [shape: f32[16,32], index: 5, kind: input, shape index: {}]
  %s6 = inlined_call_operand.vmem [shape: f32[16,1], index: 6, kind: input, shape index: {}]
  %s7 = inlined_call_operand.vmem [shape: f32[8,16], index: 7, kind: input, shape index: {}]
  %s8 = inlined_call_operand.vmem [shape: f32[8,1], index: 8, kind: input, shape index: {}]
  %s9 = inlined_call_operand.vmem [shape: f32[8,1], index: 9, kind: input, shape index: {}]
  %s10 = inlined_call_operand.<no memory space> [shape: f32[1,1], index: 10, kind: input, shape index: {}]
  %s11 = inlined_call_operand.hbm [shape: f32[1,128], index: 11, kind: output, shape index: {}]
  %s12 = sld [smem:[#allocation0]]
  $region54: #{tpu_custom_call.1} parent=0
    _
  %s14 = ssub.s32 1, %s12
  %s15 = scalar_select 0, %s14, %s12
  %v16 = vstv %s10
  %17 = vst [vmem:[#allocation2] sm:$0x1] %v16
  $region1: #{tpu_custom_call.1} parent=0
    #allocation3 [shape = 'u8[512]{0}', space=vmem, size = 0x400, scoped, tag = 'output window, operand 0, single buffered']
    #allocation4 [shape = 's32[1]{0}', space=sflag, size = 0x4, scoped, tag = 'scoped memory for tpu_custom_call.1']
    %18 = vsyncpa [#allocation4], 0
    // Predicated region
    $region2: #{tpu_custom_call.1} parent=1 // pred_check
      _
    $region3: #{tpu_custom_call.1} parent=1 // pred_check_branch
      %20 = sbr.rel (0) target = $region5
    $region4: #{tpu_custom_call.1} parent=1 // pred_region
      _
    $region5: #{tpu_custom_call.1} parent=1 // pred_fallthru
      _
    // Predicated region
    $region6: #{tpu_custom_call.1} parent=1 // pred_check
      _
    $region7: #{tpu_custom_call.1} parent=1 // pred_check_branch
      %22 = sbr.rel (0) target = $region9
    $region8: #{tpu_custom_call.1} parent=1 // pred_region
      _
    $region9: #{tpu_custom_call.1} parent=1 // pred_fallthru
      _
    // Predicated region
    $region10: #{tpu_custom_call.1} parent=1 // pred_check
      _
    $region11: #{tpu_custom_call.1} parent=1 // pred_check_branch
      %24 = sbr.rel (0) target = $region13
    $region12: #{tpu_custom_call.1} parent=1 // pred_region
      _
    $region13: #{tpu_custom_call.1} parent=1 // pred_fallthru
      _
    // Predicated region
    $region14: #{tpu_custom_call.1} parent=1 // pred_check
      _
    $region15: #{tpu_custom_call.1} parent=1 // pred_check_branch
      %26 = sbr.rel (0) target = $region17
    $region16: #{tpu_custom_call.1} parent=1 // pred_region
      _
    $region17: #{tpu_custom_call.1} parent=1 // pred_fallthru
      _
    // Predicated region
    $region18: #{tpu_custom_call.1} parent=1 // pred_check
      _
    $region19: #{tpu_custom_call.1} parent=1 // pred_check_branch
      %28 = sbr.rel (0) target = $region21
    $region20: #{tpu_custom_call.1} parent=1 // pred_region
      _
    $region21: #{tpu_custom_call.1} parent=1 // pred_fallthru
      _
    // Predicated region
    $region22: #{tpu_custom_call.1} parent=1 // pred_check
      _
    $region23: #{tpu_custom_call.1} parent=1 // pred_check_branch
      %30 = sbr.rel (0) target = $region25
    $region24: #{tpu_custom_call.1} parent=1 // pred_region
      _
    $region25: #{tpu_custom_call.1} parent=1 // pred_fallthru
      _
    // Predicated region
    $region26: #{tpu_custom_call.1} parent=1 // pred_check
      _
    $region27: #{tpu_custom_call.1} parent=1 // pred_check_branch
      %32 = sbr.rel (0) target = $region29
    $region28: #{tpu_custom_call.1} parent=1 // pred_region
      _
    $region29: #{tpu_custom_call.1} parent=1 // pred_fallthru
      _
    // Predicated region
    $region30: #{tpu_custom_call.1} parent=1 // pred_check
      _
    $region31: #{tpu_custom_call.1} parent=1 // pred_check_branch
      %34 = sbr.rel (0) target = $region33
    $region32: #{tpu_custom_call.1} parent=1 // pred_region
      _
    $region33: #{tpu_custom_call.1} parent=1 // pred_fallthru
      _
    // Predicated region
    $region34: #{tpu_custom_call.1} parent=1 // pred_check
      _
    $region35: #{tpu_custom_call.1} parent=1 // pred_check_branch
      %36 = sbr.rel (0) target = $region37
    $region36: #{tpu_custom_call.1} parent=1 // pred_region
      _
    $region37: #{tpu_custom_call.1} parent=1 // pred_fallthru
      _
    // Predicated region
    $region38: #{tpu_custom_call.1} parent=1 // pred_check
      _
    $region39: #{tpu_custom_call.1} parent=1 // pred_check_branch
      %38 = sbr.rel (0) target = $region41
    $region40: #{tpu_custom_call.1} parent=1 // pred_region
      _
    $region41: #{tpu_custom_call.1} parent=1 // pred_fallthru
      _
    // Predicated region
    $region42: #{tpu_custom_call.1} parent=1 // pred_check
      _
    $region43: #{tpu_custom_call.1} parent=1 // pred_check_branch
      %40 = sbr.rel (0) target = $region45
    $region44: #{tpu_custom_call.1} parent=1 // pred_region
      _
    $region45: #{tpu_custom_call.1} parent=1 // pred_fallthru
      _
    %v41 = vld [vmem:[%s0] sm:$0xff]
    %v42 = vld [vmem:[%s0 + $0x8] sm:$0x7f]
    %v43 = vld [vmem:[%s1] sm:$0xff]
    %v44 = vld [vmem:[%s1 + $0x8] sm:$0xff]
    %v45 = vld [vmem:[%s1 + $0x10] sm:$0xff]
    %v46 = vld [vmem:[%s1 + $0x18] sm:$0xff]
    %v47 = vld [vmem:[%s1 + $0x20] sm:$0xff]
    %v48 = vld [vmem:[%s1 + $0x28] sm:$0xff]
    %v49 = vld [vmem:[%s1 + $0x30] sm:$0xff]
    %v50 = vld [vmem:[%s1 + $0x38] sm:$0xff]
    %v51 = vld [vmem:[%s2] sm:$0xff]
    %v52 = vld [vmem:[%s2 + $0x8] sm:$0xff]
    %v53 = vld [vmem:[%s2 + $0x10] sm:$0xff]
    %v54 = vld [vmem:[%s2 + $0x18] sm:$0xff]
    %v55 = vld [vmem:[%s2 + $0x20] sm:$0xff]
    %v56 = vld [vmem:[%s2 + $0x28] sm:$0xff]
    %v57 = vld [vmem:[%s2 + $0x30] sm:$0xff]
    %v58 = vld [vmem:[%s2 + $0x38] sm:$0xff]
    %60 = vset.pattern.permute.xlu0 0
    %61 = vperm.xlu0 %60, %v51
    %v62 = vpop.permute.xlu0 %61
    %65 = vset.pattern.permute.xlu0 0
    %66 = vperm.xlu0 %65, %v52
    %v67 = vpop.permute.xlu0 %66
    %70 = vset.pattern.permute.xlu0 0
    %71 = vperm.xlu0 %70, %v53
    %v72 = vpop.permute.xlu0 %71
    %75 = vset.pattern.permute.xlu0 0
    %76 = vperm.xlu0 %75, %v54
    %v77 = vpop.permute.xlu0 %76
    %80 = vset.pattern.permute.xlu0 0
    %81 = vperm.xlu0 %80, %v55
    %v82 = vpop.permute.xlu0 %81
    %85 = vset.pattern.permute.xlu0 0
    %86 = vperm.xlu0 %85, %v56
    %v87 = vpop.permute.xlu0 %86
    %90 = vset.pattern.permute.xlu0 0
    %91 = vperm.xlu0 %90, %v57
    %v92 = vpop.permute.xlu0 %91
    %95 = vset.pattern.permute.xlu0 0
    %96 = vperm.xlu0 %95, %v58
    %v97 = vpop.permute.xlu0 %96
    %vm99 = vcmask 121856
    %v101 = vsel %vm99, %v43, 0
    %v104 = vsel %vm99, %v44, 0
    %v107 = vsel %vm99, %v45, 0
    %v110 = vsel %vm99, %v46, 0
    %v113 = vsel %vm99, %v47, 0
    %v116 = vsel %vm99, %v48, 0
    %v119 = vsel %vm99, %v49, 0
    %v122 = vsel %vm99, %v50, 0
    %vm124 = vcmask 1046528
    %v126 = vsel %vm124, %v42, 0
    %128 = vmatprep.subr.mxu0 0.0
    %129 = vmatpush1.msra.mxu0 %v41
    %130 = vmatprep.subr.mxu0 0.0
    %131 = vmatpush1.msra.mxu0 %v126
    %132 = vmatprep.subr.mxu0 0.0
    %133 = vmatpush1.msra.mxu0 0.0
    %134 = vmatprep.subr.mxu0 0.0
    %135 = vmatpush1.msra.mxu0 0.0
    %136 = vmatprep.subr.mxu0 0.0
    %137 = vmatpush1.msra.mxu0 0.0
    %138 = vmatprep.subr.mxu0 0.0
    %139 = vmatpush1.msra.mxu0 0.0
    %140 = vmatprep.subr.mxu0 0.0
    %141 = vmatpush1.msra.mxu0 0.0
    %142 = vmatprep.subr.mxu0 0.0
    %143 = vmatpush1.msra.mxu0 0.0
    %144 = vmatprep.subr.mxu0 0.0
    %145 = vmatpush1.msra.mxu0 0.0
    %146 = vmatprep.subr.mxu0 0.0
    %147 = vmatpush1.msra.mxu0 0.0
    %148 = vmatprep.subr.mxu0 0.0
    %149 = vmatpush1.msra.mxu0 0.0
    %150 = vmatprep.subr.mxu0 0.0
    %151 = vmatpush1.msra.mxu0 0.0
    %152 = vmatprep.subr.mxu0 0.0
    %153 = vmatpush1.msra.mxu0 0.0
    %154 = vmatprep.subr.mxu0 0.0
    %155 = vmatpush1.msra.mxu0 0.0
    %156 = vmatprep.subr.mxu0 0.0
    %157 = vmatpush1.msra.mxu0 0.0
    %158 = vmatprep.subr.mxu0 0.0
    %159 = vmatpush1.msra.mxu0 0.0
    %160 = vmatprep.subr.mxu0 0.0
    %161 = vmatpush1.msra.mxu0 0.0
    %162 = vmatprep.subr.mxu0 0.0
    %163 = vmatpush1.msra.mxu0 0.0
    %164 = vmatprep.subr.mxu0 0.0
    %165 = vmatpush1.msra.mxu0 0.0
    %166 = vmatprep.subr.mxu0 0.0
    %167 = vmatpush1.msra.mxu0 0.0
    %168 = vmatprep.subr.mxu0 0.0
    %169 = vmatpush1.msra.mxu0 0.0
    %170 = vmatprep.subr.mxu0 0.0
    %171 = vmatpush1.msra.mxu0 0.0
    %172 = vmatprep.subr.mxu0 0.0
    %173 = vmatpush1.msra.mxu0 0.0
    %174 = vmatprep.subr.mxu0 0.0
    %175 = vmatpush1.msra.mxu0 0.0
    %176 = vmatprep.subr.mxu0 0.0
    %177 = vmatpush1.msra.mxu0 0.0
    %178 = vmatprep.subr.mxu0 0.0
    %179 = vmatpush1.msra.mxu0 0.0
    %180 = vmatprep.subr.mxu0 0.0
    %181 = vmatpush1.msra.mxu0 0.0
    %182 = vmatprep.subr.mxu0 0.0
    %183 = vmatpush1.msra.mxu0 0.0
    %184 = vmatprep.subr.mxu0 0.0
    %185 = vmatpush1.msra.mxu0 0.0
    %186 = vmatprep.subr.mxu0 0.0
    %187 = vmatpush1.msra.mxu0 0.0
    %188 = vmatprep.subr.mxu0 0.0
    %189 = vmatpush1.msra.mxu0 0.0
    %190 = vmatprep.subr.mxu0 0.0
    %191 = vmatpush1.msra.mxu0 0.0
    %192 = vmatprep.mubr.f32.mxu0 0.0
    %193 = vmatmul.mubr.f32.gmra.mrb[0].mxu0 %v101
    %v194 = vpop.f32.mrb[0].mxu0
    %v195 = vadd.f32 %v62, %v194
    %v196 = vpop.f32.mrb[0].mxu0
    %197 = vmatprep.mubr.f32.mxu0 0.0
    %198 = vmatmul.mubr.f32.gmra.mrb[0].mxu0 %v104
    %v199 = vpop.f32.mrb[0].mxu0
    %v200 = vadd.f32 %v67, %v199
    %v201 = vpop.f32.mrb[0].mxu0
    %202 = vmatprep.mubr.f32.mxu0 0.0
    %203 = vmatmul.mubr.f32.gmra.mrb[0].mxu0 %v107
    %v204 = vpop.f32.mrb[0].mxu0
    %v205 = vadd.f32 %v72, %v204
    %v206 = vpop.f32.mrb[0].mxu0
    %207 = vmatprep.mubr.f32.mxu0 0.0
    %208 = vmatmul.mubr.f32.gmra.mrb[0].mxu0 %v110
    %v209 = vpop.f32.mrb[0].mxu0
    %v210 = vadd.f32 %v77, %v209
    %v211 = vpop.f32.mrb[0].mxu0
    %212 = vmatprep.mubr.f32.mxu0 0.0
    %213 = vmatmul.mubr.f32.gmra.mrb[0].mxu0 %v113
    %v214 = vpop.f32.mrb[0].mxu0
    %v215 = vadd.f32 %v82, %v214
    %v216 = vpop.f32.mrb[0].mxu0
    %217 = vmatprep.mubr.f32.mxu0 0.0
    %218 = vmatmul.mubr.f32.gmra.mrb[0].mxu0 %v116
    %v219 = vpop.f32.mrb[0].mxu0
    %v220 = vadd.f32 %v87, %v219
    %v221 = vpop.f32.mrb[0].mxu0
    %222 = vmatprep.mubr.f32.mxu0 0.0
    %223 = vmatmul.mubr.f32.gmra.mrb[0].mxu0 %v119
    %v224 = vpop.f32.mrb[0].mxu0
    %v225 = vadd.f32 %v92, %v224
    %v226 = vpop.f32.mrb[0].mxu0
    %227 = vmatprep.mubr.f32.mxu0 0.0
    %228 = vmatmul.mubr.f32.gmra.mrb[0].mxu0 %v122
    %v229 = vpop.f32.mrb[0].mxu0
    %v230 = vadd.f32 %v97, %v229
    %v231 = vpop.f32.mrb[0].mxu0
    %232 = vdwg.mxu0
    %v233 = vmax.f32 %v195, 0.0
    %v234 = vmax.f32 %v200, 0.0
    %v235 = vmax.f32 %v205, 0.0
    %v236 = vmax.f32 %v210, 0.0
    %v237 = vmax.f32 %v215, 0.0
    %v238 = vmax.f32 %v220, 0.0
    %v239 = vmax.f32 %v225, 0.0
    %v240 = vmax.f32 %v230, 0.0
    %v241 = vld [vmem:[%s3] sm:$0xff]
    %v242 = vld [vmem:[%s3 + $0x8] sm:$0xff]
    %v243 = vld [vmem:[%s3 + $0x10] sm:$0xff]
    %v244 = vld [vmem:[%s3 + $0x18] sm:$0xff]
    %v245 = vld [vmem:[%s4] sm:$0xff]
    %v246 = vld [vmem:[%s4 + $0x8] sm:$0xff]
    %v247 = vld [vmem:[%s4 + $0x10] sm:$0xff]
    %v248 = vld [vmem:[%s4 + $0x18] sm:$0xff]
    %250 = vset.pattern.permute.xlu0 0
    %251 = vperm.xlu0 %250, %v245
    %v252 = vpop.permute.xlu0 %251
    %255 = vset.pattern.permute.xlu0 0
    %256 = vperm.xlu0 %255, %v246
    %v257 = vpop.permute.xlu0 %256
    %260 = vset.pattern.permute.xlu0 0
    %261 = vperm.xlu0 %260, %v247
    %v262 = vpop.permute.xlu0 %261
    %265 = vset.pattern.permute.xlu0 0
    %266 = vperm.xlu0 %265, %v248
    %v267 = vpop.permute.xlu0 %266
    %vm269 = vcmask 523264
    %v271 = vsel %vm269, %v241, 0
    %v274 = vsel %vm269, %v242, 0
    %v277 = vsel %vm269, %v243, 0
    %v280 = vsel %vm269, %v244, 0
    %282 = vmatprep.subr.mxu0 0.0
    %283 = vmatpush1.msra.mxu0 %v233
    %284 = vmatprep.subr.mxu0 0.0
    %285 = vmatpush1.msra.mxu0 %v234
    %286 = vmatprep.subr.mxu0 0.0
    %287 = vmatpush1.msra.mxu0 %v235
    %288 = vmatprep.subr.mxu0 0.0
    %289 = vmatpush1.msra.mxu0 %v236
    %290 = vmatprep.subr.mxu0 0.0
    %291 = vmatpush1.msra.mxu0 %v237
    %292 = vmatprep.subr.mxu0 0.0
    %293 = vmatpush1.msra.mxu0 %v238
    %294 = vmatprep.subr.mxu0 0.0
    %295 = vmatpush1.msra.mxu0 %v239
    %296 = vmatprep.subr.mxu0 0.0
    %297 = vmatpush1.msra.mxu0 %v240
    %298 = vmatprep.subr.mxu0 0.0
    %299 = vmatpush1.msra.mxu0 0.0
    %300 = vmatprep.subr.mxu0 0.0
    %301 = vmatpush1.msra.mxu0 0.0
    %302 = vmatprep.subr.mxu0 0.0
    %303 = vmatpush1.msra.mxu0 0.0
    %304 = vmatprep.subr.mxu0 0.0
    %305 = vmatpush1.msra.mxu0 0.0
    %306 = vmatprep.subr.mxu0 0.0
    %307 = vmatpush1.msra.mxu0 0.0
    %308 = vmatprep.subr.mxu0 0.0
    %309 = vmatpush1.msra.mxu0 0.0
    %310 = vmatprep.subr.mxu0 0.0
    %311 = vmatpush1.msra.mxu0 0.0
    %312 = vmatprep.subr.mxu0 0.0
    %313 = vmatpush1.msra.mxu0 0.0
    %314 = vmatprep.subr.mxu0 0.0
    %315 = vmatpush1.msra.mxu0 0.0
    %316 = vmatprep.subr.mxu0 0.0
    %317 = vmatpush1.msra.mxu0 0.0
    %318 = vmatprep.subr.mxu0 0.0
    %319 = vmatpush1.msra.mxu0 0.0
    %320 = vmatprep.subr.mxu0 0.0
    %321 = vmatpush1.msra.mxu0 0.0
    %322 = vmatprep.subr.mxu0 0.0
    %323 = vmatpush1.msra.mxu0 0.0
    %324 = vmatprep.subr.mxu0 0.0
    %325 = vmatpush1.msra.mxu0 0.0
    %326 = vmatprep.subr.mxu0 0.0
    %327 = vmatpush1.msra.mxu0 0.0
    %328 = vmatprep.subr.mxu0 0.0
    %329 = vmatpush1.msra.mxu0 0.0
    %330 = vmatprep.subr.mxu0 0.0
    %331 = vmatpush1.msra.mxu0 0.0
    %332 = vmatprep.subr.mxu0 0.0
    %333 = vmatpush1.msra.mxu0 0.0
    %334 = vmatprep.subr.mxu0 0.0
    %335 = vmatpush1.msra.mxu0 0.0
    %336 = vmatprep.subr.mxu0 0.0
    %337 = vmatpush1.msra.mxu0 0.0
    %338 = vmatprep.subr.mxu0 0.0
    %339 = vmatpush1.msra.mxu0 0.0
    %340 = vmatprep.subr.mxu0 0.0
    %341 = vmatpush1.msra.mxu0 0.0
    %342 = vmatprep.subr.mxu0 0.0
    %343 = vmatpush1.msra.mxu0 0.0
    %344 = vmatprep.subr.mxu0 0.0
    %345 = vmatpush1.msra.mxu0 0.0
    %346 = vmatprep.mubr.f32.mxu0 0.0
    %347 = vmatmul.mubr.f32.gmra.mrb[0].mxu0 %v271
    %v348 = vpop.f32.mrb[0].mxu0
    %v349 = vadd.f32 %v252, %v348
    %v350 = vpop.f32.mrb[0].mxu0
    %351 = vmatprep.mubr.f32.mxu0 0.0
    %352 = vmatmul.mubr.f32.gmra.mrb[0].mxu0 %v274
    %v353 = vpop.f32.mrb[0].mxu0
    %v354 = vadd.f32 %v257, %v353
    %v355 = vpop.f32.mrb[0].mxu0
    %356 = vmatprep.mubr.f32.mxu0 0.0
    %357 = vmatmul.mubr.f32.gmra.mrb[0].mxu0 %v277
    %v358 = vpop.f32.mrb[0].mxu0
    %v359 = vadd.f32 %v262, %v358
    %v360 = vpop.f32.mrb[0].mxu0
    %361 = vmatprep.mubr.f32.mxu0 0.0
    %362 = vmatmul.mubr.f32.gmra.mrb[0].mxu0 %v280
    %v363 = vpop.f32.mrb[0].mxu0
    %v364 = vadd.f32 %v267, %v363
    %v365 = vpop.f32.mrb[0].mxu0
    %366 = vdwg.mxu0
    %v367 = vmax.f32 %v349, 0.0
    %v368 = vmax.f32 %v354, 0.0
    %v369 = vmax.f32 %v359, 0.0
    %v370 = vmax.f32 %v364, 0.0
    %v371 = vld [vmem:[%s5] sm:$0xff]
    %v372 = vld [vmem:[%s5 + $0x8] sm:$0xff]
    %v373 = vld [vmem:[%s6] sm:$0xff]
    %v374 = vld [vmem:[%s6 + $0x8] sm:$0xff]
    %376 = vset.pattern.permute.xlu0 0
    %377 = vperm.xlu0 %376, %v373
    %v378 = vpop.permute.xlu0 %377
    %381 = vset.pattern.permute.xlu0 0
    %382 = vperm.xlu0 %381, %v374
    %v383 = vpop.permute.xlu0 %382
    %vm385 = vcmask 261120
    %v387 = vsel %vm385, %v371, 0
    %v390 = vsel %vm385, %v372, 0
    %392 = vmatprep.subr.mxu0 0.0
    %393 = vmatpush1.msra.mxu0 %v367
    %394 = vmatprep.subr.mxu0 0.0
    %395 = vmatpush1.msra.mxu0 %v368
    %396 = vmatprep.subr.mxu0 0.0
    %397 = vmatpush1.msra.mxu0 %v369
    %398 = vmatprep.subr.mxu0 0.0
    %399 = vmatpush1.msra.mxu0 %v370
    %400 = vmatprep.subr.mxu0 0.0
    %401 = vmatpush1.msra.mxu0 0.0
    %402 = vmatprep.subr.mxu0 0.0
    %403 = vmatpush1.msra.mxu0 0.0
    %404 = vmatprep.subr.mxu0 0.0
    %405 = vmatpush1.msra.mxu0 0.0
    %406 = vmatprep.subr.mxu0 0.0
    %407 = vmatpush1.msra.mxu0 0.0
    %408 = vmatprep.subr.mxu0 0.0
    %409 = vmatpush1.msra.mxu0 0.0
    %410 = vmatprep.subr.mxu0 0.0
    %411 = vmatpush1.msra.mxu0 0.0
    %412 = vmatprep.subr.mxu0 0.0
    %413 = vmatpush1.msra.mxu0 0.0
    %414 = vmatprep.subr.mxu0 0.0
    %415 = vmatpush1.msra.mxu0 0.0
    %416 = vmatprep.subr.mxu0 0.0
    %417 = vmatpush1.msra.mxu0 0.0
    %418 = vmatprep.subr.mxu0 0.0
    %419 = vmatpush1.msra.mxu0 0.0
    %420 = vmatprep.subr.mxu0 0.0
    %421 = vmatpush1.msra.mxu0 0.0
    %422 = vmatprep.subr.mxu0 0.0
    %423 = vmatpush1.msra.mxu0 0.0
    %424 = vmatprep.subr.mxu0 0.0
    %425 = vmatpush1.msra.mxu0 0.0
    %426 = vmatprep.subr.mxu0 0.0
    %427 = vmatpush1.msra.mxu0 0.0
    %428 = vmatprep.subr.mxu0 0.0
    %429 = vmatpush1.msra.mxu0 0.0
    %430 = vmatprep.subr.mxu0 0.0
    %431 = vmatpush1.msra.mxu0 0.0
    %432 = vmatprep.subr.mxu0 0.0
    %433 = vmatpush1.msra.mxu0 0.0
    %434 = vmatprep.subr.mxu0 0.0
    %435 = vmatpush1.msra.mxu0 0.0
    %436 = vmatprep.subr.mxu0 0.0
    %437 = vmatpush1.msra.mxu0 0.0
    %438 = vmatprep.subr.mxu0 0.0
    %439 = vmatpush1.msra.mxu0 0.0
    %440 = vmatprep.subr.mxu0 0.0
    %441 = vmatpush1.msra.mxu0 0.0
    %442 = vmatprep.subr.mxu0 0.0
    %443 = vmatpush1.msra.mxu0 0.0
    %444 = vmatprep.subr.mxu0 0.0
    %445 = vmatpush1.msra.mxu0 0.0
    %446 = vmatprep.subr.mxu0 0.0
    %447 = vmatpush1.msra.mxu0 0.0
    %448 = vmatprep.subr.mxu0 0.0
    %449 = vmatpush1.msra.mxu0 0.0
    %450 = vmatprep.subr.mxu0 0.0
    %451 = vmatpush1.msra.mxu0 0.0
    %452 = vmatprep.subr.mxu0 0.0
    %453 = vmatpush1.msra.mxu0 0.0
    %454 = vmatprep.subr.mxu0 0.0
    %455 = vmatpush1.msra.mxu0 0.0
    %456 = vmatprep.mubr.f32.mxu0 0.0
    %457 = vmatmul.mubr.f32.gmra.mrb[0].mxu0 %v387
    %v458 = vpop.f32.mrb[0].mxu0
    %v459 = vadd.f32 %v378, %v458
    %v460 = vpop.f32.mrb[0].mxu0
    %461 = vmatprep.mubr.f32.mxu0 0.0
    %462 = vmatmul.mubr.f32.gmra.mrb[0].mxu0 %v390
    %v463 = vpop.f32.mrb[0].mxu0
    %v464 = vadd.f32 %v383, %v463
    %v465 = vpop.f32.mrb[0].mxu0
    %466 = vdwg.mxu0
    %v467 = vmax.f32 %v459, 0.0
    %v468 = vmax.f32 %v464, 0.0
    %v469 = vld [vmem:[%s7] sm:$0xff]
    %v470 = vld [vmem:[%s8] sm:$0xff]
    %472 = vset.pattern.permute.xlu0 0
    %473 = vperm.xlu0 %472, %v470
    %v474 = vpop.permute.xlu0 %473
    %vm476 = vcmask 130048
    %v478 = vsel %vm476, %v469, 0
    %480 = vmatprep.subr.mxu0 0.0
    %481 = vmatpush1.msra.mxu0 %v467
    %482 = vmatprep.subr.mxu0 0.0
    %483 = vmatpush1.msra.mxu0 %v468
    %484 = vmatprep.subr.mxu0 0.0
    %485 = vmatpush1.msra.mxu0 0.0
    %486 = vmatprep.subr.mxu0 0.0
    %487 = vmatpush1.msra.mxu0 0.0
    %488 = vmatprep.subr.mxu0 0.0
    %489 = vmatpush1.msra.mxu0 0.0
    %490 = vmatprep.subr.mxu0 0.0
    %491 = vmatpush1.msra.mxu0 0.0
    %492 = vmatprep.subr.mxu0 0.0
    %493 = vmatpush1.msra.mxu0 0.0
    %494 = vmatprep.subr.mxu0 0.0
    %495 = vmatpush1.msra.mxu0 0.0
    %496 = vmatprep.subr.mxu0 0.0
    %497 = vmatpush1.msra.mxu0 0.0
    %498 = vmatprep.subr.mxu0 0.0
    %499 = vmatpush1.msra.mxu0 0.0
    %500 = vmatprep.subr.mxu0 0.0
    %501 = vmatpush1.msra.mxu0 0.0
    %502 = vmatprep.subr.mxu0 0.0
    %503 = vmatpush1.msra.mxu0 0.0
    %504 = vmatprep.subr.mxu0 0.0
    %505 = vmatpush1.msra.mxu0 0.0
    %506 = vmatprep.subr.mxu0 0.0
    %507 = vmatpush1.msra.mxu0 0.0
    %508 = vmatprep.subr.mxu0 0.0
    %509 = vmatpush1.msra.mxu0 0.0
    %510 = vmatprep.subr.mxu0 0.0
    %511 = vmatpush1.msra.mxu0 0.0
    %512 = vmatprep.subr.mxu0 0.0
    %513 = vmatpush1.msra.mxu0 0.0
    %514 = vmatprep.subr.mxu0 0.0
    %515 = vmatpush1.msra.mxu0 0.0
    %516 = vmatprep.subr.mxu0 0.0
    %517 = vmatpush1.msra.mxu0 0.0
    %518 = vmatprep.subr.mxu0 0.0
    %519 = vmatpush1.msra.mxu0 0.0
    %520 = vmatprep.subr.mxu0 0.0
    %521 = vmatpush1.msra.mxu0 0.0
    %522 = vmatprep.subr.mxu0 0.0
    %523 = vmatpush1.msra.mxu0 0.0
    %524 = vmatprep.subr.mxu0 0.0
    %525 = vmatpush1.msra.mxu0 0.0
    %526 = vmatprep.subr.mxu0 0.0
    %527 = vmatpush1.msra.mxu0 0.0
    %528 = vmatprep.subr.mxu0 0.0
    %529 = vmatpush1.msra.mxu0 0.0
    %530 = vmatprep.subr.mxu0 0.0
    %531 = vmatpush1.msra.mxu0 0.0
    %532 = vmatprep.subr.mxu0 0.0
    %533 = vmatpush1.msra.mxu0 0.0
    %534 = vmatprep.subr.mxu0 0.0
    %535 = vmatpush1.msra.mxu0 0.0
    %536 = vmatprep.subr.mxu0 0.0
    %537 = vmatpush1.msra.mxu0 0.0
    %538 = vmatprep.subr.mxu0 0.0
    %539 = vmatpush1.msra.mxu0 0.0
    %540 = vmatprep.subr.mxu0 0.0
    %541 = vmatpush1.msra.mxu0 0.0
    %542 = vmatprep.subr.mxu0 0.0
    %543 = vmatpush1.msra.mxu0 0.0
    %544 = vmatprep.mubr.f32.mxu0 0.0
    %545 = vmatmul.mubr.f32.gmra.mrb[0].mxu0 %v478
    %v546 = vpop.f32.mrb[0].mxu0
    %v547 = vadd.f32 %v474, %v546
    %v548 = vpop.f32.mrb[0].mxu0
    %549 = vdwg.mxu0
    %v550 = vmax.f32 %v547, 0.0
    %v551 = vld [vmem:[%s9] sm:$0xff]
    %553 = vset.pattern.permute.xlu0 0
    %554 = vperm.xlu0 %553, %v551
    %v555 = vpop.permute.xlu0 %554
    %v557 = vmul.f32 %v550, %v555
    %v558 = vrot.slane %v557, 4
    %v559 = vadd.f32 %v557, %v558
    %v560 = vrot.slane %v559, 2
    %v561 = vadd.f32 %v559, %v560
    %v562 = vrot.slane %v561, 1
    %v563 = vadd.f32 %v561, %v562
    %v564 = vld [vmem:[#allocation2] sm:$0x1]
    %566 = vset.pattern.permute.xlu0 0
    %567 = vperm.xlu0 %566, %v564
    %v568 = vpop.permute.xlu0 %567
    %v570 = vlaneseq
    %v571 = vshrl.u32 %v570, 7
    %v572 = vsub.s32 0, %v571
    %v573 = vrot.slane %v568, %v572
    %v574 = vadd.f32 %v563, %v573
    %v575 = vsub.f32 0.0, %v574
    %v576 = vmul.f32 %v575, 1.442695
    %v577 = vpow.pop %v576
    %v578 = vadd.f32 %v577, 1.0
    %v579 = vrcp.pop %v578
    %v580 = vmul.f32 1.0, %v579
    %581 = vst [vmem:[#allocation3] sm:$0x1] %v580
    // Predicated region
    $region46: #{tpu_custom_call.1} parent=1 // pred_check
      _
    $region47: #{tpu_custom_call.1} parent=1 // pred_check_branch
      %583 = sbr.rel (0) target = $region49
    $region48: #{tpu_custom_call.1} parent=1 // pred_region
      %s585 = ssub.s32 16, 16
      %586 = vsyncadd [#allocation4], %s585
      %s588 = sshll.u32 [#allocation3], 4
      %s589 = int_to_ptr.vmem [resolvable:$true] %s588
      %591 = dma.vmem_to_hbm [thread:$0]  %s589, 16, %s11, [#allocation4]
    $region49: #{tpu_custom_call.1} parent=1 // pred_fallthru
      _
    // Predicated region
    $region50: #{tpu_custom_call.1} parent=1 // pred_check
      _
    $region51: #{tpu_custom_call.1} parent=1 // pred_check_branch
      %593 = sbr.rel (0) target = $region53
    $region52: #{tpu_custom_call.1} parent=1 // pred_region
      %594 = dma.done [#allocation4], 16
    $region53: #{tpu_custom_call.1} parent=1 // pred_fallthru
      _
    %595 = vsyncpa [#allocation4], 1

</llo_original>
